<compile_context>
chip_gen: v5e
topology: v5e:2x2
jax: 0.10.0
libtpu: 0.0.40
codegen_flags: <defaults>
</compile_context>

<pallas_src>
import functools

import jax
import jax.numpy as jnp
from jax import lax
from jax.experimental import pallas as pl
from jax.experimental.pallas import tpu as pltpu


_NT = (((1,), (1,)), ((), ()))  # contract last dims of both operands (A @ B^T)


def attention_mlp_kernel(ei_ref, ej_ref, wi_ref, wj_ref, b_ref, ua_ref, out_ref,
                         *, groups, attn_dim, chunk):
    """One packed-row tile, computed in a lane-dense (P*K*A, rows) layout.

    ei_ref : (TR, P*E)       packed e_i rows (P original rows per packed row)
    ej_ref : (TR, P*K*E)     packed e_j rows (dominant HBM stream)
    wi_ref : (P*K*A, P*E)    kron(I_P, tile(Wi, K))
    wj_ref : (P*K*A, P*K*E)  kron(I_{P*K}, Wj)   (block diagonal)
    b_ref  : (P*K*A, 1)      bias tiled P*K times (f32)
    ua_ref : (P*K*A, 1)      ua   tiled P*K times (f32)
    out_ref: (P*K, TR)       attention scores, lane-dense over packed rows
    """
    ga = groups * attn_dim
    tr = out_ref.shape[-1]
    num_chunks = tr // chunk  # static; tr is a multiple of chunk by construction

    # Hoisted: resident weights and lane-broadcast bias/ua (JAX does not CSE
    # broadcast_in_dim inside loops, so build the broadcasts once).
    wi = wi_ref[...]
    wj = wj_ref[...]
    b_full = jnp.broadcast_to(b_ref[...], (ga, chunk))
    ua_full = jnp.broadcast_to(ua_ref[...], (ga, chunk))

    # Fully-unrolled static loop over column sub-chunks: big DMA tile, small
    # live intermediates, static (aligned) slice offsets for Mosaic.
    for c in range(num_chunks):
        col = c * chunk
        ei = ei_ref[pl.ds(col, chunk), :]                      # (chunk, P*E)
        ej = ej_ref[pl.ds(col, chunk), :]                      # (chunk, P*K*E)
        # Two MXU contractions over the feature dims; the packed-row dim lands
        # on the 128-lane axis, accumulation in f32.
        hj = lax.dot_general(wj, ej, _NT, preferred_element_type=jnp.float32)
        hi = lax.dot_general(wi, ei, _NT, preferred_element_type=jnp.float32)
        # TODO(synk): fusing hi into hj (single [Wi|Wj] weight + packed
        # activation) would remove another full MXU sweep but needs either an
        # extra HBM materialization or an in-kernel lane repack; left separate.
        h = jnp.tanh(hj + hi + b_full)                         # (P*K*A, chunk), EUP
        # ua reduction on VPU/XLU (keeps the MXU free): scale, then sum over
        # the attention dim inside each (packed-row, k) group.
        scaled = h * ua_full
        out = jnp.sum(scaled.reshape(groups, attn_dim, chunk), axis=1)  # (P*K, chunk)
        out_ref[:, pl.ds(col, chunk)] = out.astype(out_ref.dtype)


def _round_up(x, m):
    return ((x + m - 1) // m) * m


def _choose_row_tiles(rows, target):
    """Pick (row_tile, sub_chunk) in packed rows.

    Row tile is a multiple of 128 (lane-dense output stores), capped at the
    padded row count (ragged last block, no input padding), and split so the
    grid has >= 2 steps when possible (keeps both v7x TensorCores busy)."""
    if rows < 128:
        return rows, rows  # single exact block for tiny problems
    ceil128 = _round_up(rows, 128)
    tr = min(_round_up(max(target, 128), 128), ceil128)
    if tr == ceil128 and ceil128 >= 256:
        tr = min(tr, _round_up((rows + 1) // 2, 128))
    for tc in (512, 256, 128):
        if tr % tc == 0:
            return tr, tc
    return tr, 128


@functools.partial(jax.jit, static_argnames=("row_tile", "compute_dtype"))
def attention_mlp(e_i, e_j, W, bias, ua, *, row_tile=8192, compute_dtype=None):
    """Pallas TPU implementation of AttentionMLP.forward.

    e_i : (B, N, M, E)      e_j : (B, N, M, K, E)
    W   : (A, 2E)  (PyTorch nn.Linear weight layout)
    bias: (A,)     ua : (A,)
    returns attn_score: (B, N, M, K) float32

    compute_dtype: optional dtype (e.g. jnp.bfloat16) for the activations and
    replicated weights fed to the MXU; tanh, bias/ua and all accumulation stay
    float32.
    """
    B, N, M, E = e_i.shape
    K = e_j.shape[-2]
    A = W.shape[0]
    R = B * N * M
    cdtype = jnp.dtype(compute_dtype) if compute_dtype is not None else e_i.dtype

    # Row packing: P original rows per MXU activation column so the
    # block-diagonal weight fills the 256-wide MXU (guarded for other configs).
    P = 2 if (R % 2 == 0 and 2 * K * A <= 256 and 2 * K * E <= 256) else 1
    G = P * K                                   # score groups per packed row
    GA, GE, PE = G * A, G * E, P * E
    if GA * GE * 4 > 8 * 1024 * 1024:
        raise NotImplementedError(
            "K*A / K*E too large for the block-diagonal weight expansion; "
            "this kernel assumes small attention fan-out (K*A, K*E <~ 10^3).")

    # Tiny resident parameter blocks, built once.
    Wi = W[:, :E].astype(jnp.float32)
    Wj = W[:, E:].astype(jnp.float32)
    wj_big = jnp.kron(jnp.eye(G, dtype=jnp.float32), Wj).astype(cdtype)      # (GA, GE)
    wi_big = jnp.kron(jnp.eye(P, dtype=jnp.float32),
                      jnp.tile(Wi, (K, 1))).astype(cdtype)                   # (GA, PE)
    b_col = jnp.tile(bias.astype(jnp.float32), (G,)).reshape(GA, 1)
    ua_col = jnp.tile(ua.astype(jnp.float32), (G,)).reshape(GA, 1)

    # Activations: free row-major reshapes, optional bf16 cast, NO padding.
    Rp = R // P
    ei_f = e_i.reshape(Rp, PE).astype(cdtype)
    ej_f = e_j.reshape(Rp, GE).astype(cdtype)

    TR, TC = _choose_row_tiles(Rp, max(row_tile // P, 128))
    grid = (pl.cdiv(Rp, TR),)   # ragged last block; masked writeback drops garbage

    kernel = functools.partial(attention_mlp_kernel, groups=G, attn_dim=A, chunk=TC)

    itemsize = jnp.dtype(cdtype).itemsize
    cost = pl.CostEstimate(
        flops=2 * R * K * A * (2 * E) + 2 * R * K * A,
        transcendentals=R * K * A,
        bytes_accessed=(R * (E + K * E) * itemsize + R * K * 4
                        + GA * (GE + PE) * itemsize + 2 * GA * 4),
    )

    out_t = pl.pallas_call(
        kernel,
        out_shape=jax.ShapeDtypeStruct((G, Rp), jnp.float32),
        grid_spec=pltpu.PrefetchScalarGridSpec(
            num_scalar_prefetch=0,
            grid=grid,
            in_specs=[
                pl.BlockSpec((TR, PE), lambda i: (i, 0)),    # e_i packed rows
                pl.BlockSpec((TR, GE), lambda i: (i, 0)),    # e_j packed rows (dominant)
                pl.BlockSpec((GA, PE), lambda i: (0, 0)),    # resident params
                pl.BlockSpec((GA, GE), lambda i: (0, 0)),
                pl.BlockSpec((GA, 1), lambda i: (0, 0)),
                pl.BlockSpec((GA, 1), lambda i: (0, 0)),
            ],
            out_specs=pl.BlockSpec((G, TR), lambda i: (0, i)),
        ),
        compiler_params=pltpu.CompilerParams(
            dimension_semantics=("parallel",),           # rows shard across v7x TCs
            vmem_limit_bytes=32 * 1024 * 1024,           # safe on v5e/v6e/v7x
        ),
        cost_estimate=cost,
    )(ei_f, ej_f, wi_big, wj_big, b_col, ua_col)

    # Only the small score tensor is transposed; the reshape that undoes the
    # P=2 row packing is a free row-major reshape.
    # TODO(synk): a consumer that accepts the (P*K, R//P) layout (or fuses this
    # transpose into its own op) saves ~2*R*K*4 bytes of extra HBM traffic.
    return out_t.T.reshape(B, N, M, K)


def attention_mlp_ref(e_i, e_j, W, bias, ua):
    """Pure-JAX reference matching the PyTorch forward exactly."""
    e_i_rep = jnp.broadcast_to(e_i[..., None, :], e_j.shape)          # (B,N,M,K,E)
    combined = jnp.concatenate([e_i_rep, e_j], axis=-1)               # (B,N,M,K,2E)
    mlp = jnp.tanh(jnp.einsum("...d,ad->...a", combined, W) + bias)   # (B,N,M,K,A)
    return jnp.einsum("...a,a->...", mlp, ua)                         # (B,N,M,K)


if __name__ == "__main__":
    # Small shapes consistent with the module's forward.
    B, N, M, K = 2, 2, 4, 8
    emb_dim, attn_dim = 8, 16

    key = jax.random.PRNGKey(0)
    k_ei, k_ej, k_w, k_b, k_ua = jax.random.split(key, 5)

    e_i = jax.random.normal(k_ei, (B, N, M, emb_dim), dtype=jnp.float32)
    e_j = jax.random.normal(k_ej, (B, N, M, K, emb_dim), dtype=jnp.float32)

    # Deterministic parameter init (shapes from nn.Linear(2*emb, attn) + Parameter(attn)).
    fan_in, fan_out = 2 * emb_dim, attn_dim
    xavier_bound = (6.0 / (fan_in + fan_out)) ** 0.5
    W = jax.random.uniform(k_w, (attn_dim, 2 * emb_dim), dtype=jnp.float32,
                           minval=-xavier_bound, maxval=xavier_bound)
    bias_bound = 1.0 / (fan_in ** 0.5)
    bias = jax.random.uniform(k_b, (attn_dim,), dtype=jnp.float32,
                              minval=-bias_bound, maxval=bias_bound)
    ua = jax.random.normal(k_ua, (attn_dim,), dtype=jnp.float32)

    ref = attention_mlp_ref(e_i, e_j, W, bias, ua)

    # float32 path (matches the PyTorch module numerics).
    out = jax.block_until_ready(attention_mlp(e_i, e_j, W, bias, ua))
    assert out.shape == (B, N, M, K)
    assert jnp.allclose(out, ref, atol=2e-4, rtol=2e-4), "f32 mismatch vs reference"

    # bf16 MXU path (halves the dominant e_j HBM stream; tanh/acc stay f32).
    out_bf16 = jax.block_until_ready(
        attention_mlp(e_i, e_j, W, bias, ua, compute_dtype=jnp.bfloat16))
    assert out_bf16.shape == (B, N, M, K)
    assert jnp.allclose(out_bf16, ref, atol=3e-1, rtol=5e-2), "bf16 path diverged"

    print("KERNEL_OK")
</pallas_src>

<mosaic_0001>
module attributes {stable_mosaic.version = 11 : i64} {
  func.func @attention_mlp_kernel(%arg0: i32, %arg1: memref<8x16xf32, #tpu.memory_space<vmem>>, %arg2: memref<8x128xf32, #tpu.memory_space<vmem>>, %arg3: memref<256x16xf32, #tpu.memory_space<vmem>>, %arg4: memref<256x128xf32, #tpu.memory_space<vmem>>, %arg5: memref<256x1xf32, #tpu.memory_space<vmem>>, %arg6: memref<256x1xf32, #tpu.memory_space<vmem>>, %arg7: memref<16x8xf32, #tpu.memory_space<vmem>>) attributes {dimension_semantics = [#tpu.dimension_semantics<parallel>], iteration_bounds = array<i64: 1>, scalar_prefetch = 0 : i64, scratch_operands = 0 : i64, tpu.core_type = #tpu.core_type<tc>, window_params = [{transform_indices = @transform_0, window_bounds = array<i64: 8, 16>}, {transform_indices = @transform_1, window_bounds = array<i64: 8, 128>}, {pipeline_mode = #tpu.pipeline_mode<synchronous>, transform_indices = @transform_2, window_bounds = array<i64: 256, 16>}, {pipeline_mode = #tpu.pipeline_mode<synchronous>, transform_indices = @transform_3, window_bounds = array<i64: 256, 128>}, {pipeline_mode = #tpu.pipeline_mode<synchronous>, transform_indices = @transform_4, window_bounds = array<i64: 256, 1>}, {pipeline_mode = #tpu.pipeline_mode<synchronous>, transform_indices = @transform_5, window_bounds = array<i64: 256, 1>}, {transform_indices = @transform_6, window_bounds = array<i64: 16, 8>}]} {
    %c0 = arith.constant 0 : index
    %c0_0 = arith.constant 0 : index
    %0 = vector.load %arg3[%c0, %c0_0] : memref<256x16xf32, #tpu.memory_space<vmem>>, vector<256x16xf32>
    %c0_1 = arith.constant 0 : index
    %c0_2 = arith.constant 0 : index
    %1 = vector.load %arg4[%c0_1, %c0_2] : memref<256x128xf32, #tpu.memory_space<vmem>>, vector<256x128xf32>
    %c0_3 = arith.constant 0 : index
    %c0_4 = arith.constant 0 : index
    %2 = vector.load %arg5[%c0_3, %c0_4] : memref<256x1xf32, #tpu.memory_space<vmem>>, vector<256x1xf32>
    %3 = vector.shape_cast %2 : vector<256x1xf32> to vector<256x1xf32>
    %4 = vector.broadcast %3 : vector<256x1xf32> to vector<256x8xf32>
    %c0_5 = arith.constant 0 : index
    %c0_6 = arith.constant 0 : index
    %5 = vector.load %arg6[%c0_5, %c0_6] : memref<256x1xf32, #tpu.memory_space<vmem>>, vector<256x1xf32>
    %6 = vector.shape_cast %5 : vector<256x1xf32> to vector<256x1xf32>
    %7 = vector.broadcast %6 : vector<256x1xf32> to vector<256x8xf32>
    %c0_7 = arith.constant 0 : index
    %c0_8 = arith.constant 0 : index
    %8 = vector.load %arg1[%c0_7, %c0_8] : memref<8x16xf32, #tpu.memory_space<vmem>>, vector<8x16xf32>
    %c0_9 = arith.constant 0 : index
    %c0_10 = arith.constant 0 : index
    %9 = vector.load %arg2[%c0_9, %c0_10] : memref<8x128xf32, #tpu.memory_space<vmem>>, vector<8x128xf32>
    %cst = arith.constant dense<0.000000e+00> : vector<256x8xf32>
    %10 = tpu.matmul %1, %9, %cst {dimension_numbers = #tpu.dot_dimension_numbers<[1], [1], [0], [0], [0, 0, 1, 0], [], []>} : vector<256x128xf32>, vector<8x128xf32>, vector<256x8xf32> -> vector<256x8xf32>
    %cst_11 = arith.constant dense<0.000000e+00> : vector<256x8xf32>
    %11 = tpu.matmul %0, %8, %cst_11 {dimension_numbers = #tpu.dot_dimension_numbers<[1], [1], [0], [0], [0, 0, 1, 0], [], []>} : vector<256x16xf32>, vector<8x16xf32>, vector<256x8xf32> -> vector<256x8xf32>
    %12 = arith.addf %10, %11 : vector<256x8xf32>
    %13 = arith.addf %12, %4 : vector<256x8xf32>
    %14 = math.tanh %13 : vector<256x8xf32>
    %15 = arith.mulf %14, %7 : vector<256x8xf32>
    %16 = vector.shape_cast %15 : vector<256x8xf32> to vector<16x16x8xf32>
    %cst_12 = arith.constant dense<0.000000e+00> : vector<16x8xf32>
    %17 = vector.multi_reduction <add>, %16, %cst_12 [1] : vector<16x16x8xf32> to vector<16x8xf32>
    %c0_13 = arith.constant 0 : index
    %c0_14 = arith.constant 0 : index
    %18 = vector.load %arg7[%c0_13, %c0_14] : memref<16x8xf32, #tpu.memory_space<vmem>>, vector<16x8xf32>
    tpu.vector_store %arg7[%c0_13, %c0_14], %17 {strides = array<i32>} : memref<16x8xf32, #tpu.memory_space<vmem>>, vector<16x8xf32>,
    return
  }
  func.func @transform_0(%arg0: i32) -> (i32, i32) {
    %c0_i32 = arith.constant 0 : i32
    %c0_i32_0 = arith.constant 0 : i32
    return %arg0, %c0_i32 : i32, i32
  }
  func.func @transform_1(%arg0: i32) -> (i32, i32) {
    %c0_i32 = arith.constant 0 : i32
    %c0_i32_0 = arith.constant 0 : i32
    return %arg0, %c0_i32 : i32, i32
  }
  func.func @transform_2(%arg0: i32) -> (i32, i32) {
    %c0_i32 = arith.constant 0 : i32
    %c0_i32_0 = arith.constant 0 : i32
    %c0_i32_1 = arith.constant 0 : i32
    return %c0_i32, %c0_i32_0 : i32, i32
  }
  func.func @transform_3(%arg0: i32) -> (i32, i32) {
    %c0_i32 = arith.constant 0 : i32
    %c0_i32_0 = arith.constant 0 : i32
    %c0_i32_1 = arith.constant 0 : i32
    return %c0_i32, %c0_i32_0 : i32, i32
  }
  func.func @transform_4(%arg0: i32) -> (i32, i32) {
    %c0_i32 = arith.constant 0 : i32
    %c0_i32_0 = arith.constant 0 : i32
    %c0_i32_1 = arith.constant 0 : i32
    return %c0_i32, %c0_i32_0 : i32, i32
  }
  func.func @transform_5(%arg0: i32) -> (i32, i32) {
    %c0_i32 = arith.constant 0 : i32
    %c0_i32_0 = arith.constant 0 : i32
    %c0_i32_1 = arith.constant 0 : i32
    return %c0_i32, %c0_i32_0 : i32, i32
  }
  func.func @transform_6(%arg0: i32) -> (i32, i32) {
    %c0_i32 = arith.constant 0 : i32
    %c0_i32_0 = arith.constant 0 : i32
    return %c0_i32, %arg0 : i32, i32
  }
}

</mosaic_0001>

<llo_original>
// kernel: tile.23
$region0: #{tile.23}
  #allocation0 [shape = 's32[1]{0}', space=sflag, size = 0x4, scoped, tag = 'scoped memory for tile.23']
  %s0 = inlined_call_operand.vmem [shape: f32[16], index: 0, kind: input, shape index: {}]
  %s1 = inlined_call_operand.vmem [shape: f32[16,16], index: 1, kind: output, shape index: {}]
  // Predicated region
  $region2: #{tile.23} parent=0 // pred_check
    _
  $region3: #{tile.23} parent=0 // pred_check_branch
    %3 = sbr.rel (0) target = $region5
  $region4: #{tile.23} parent=0 // pred_region
    _
  $region5: #{tile.23} parent=0 // pred_fallthru
    _
  %v4 = vld [vmem:[%s0] ss:$0 sm:$0xff]
  %5 = vst [vmem:[%s1] sm:$0xff] %v4
  %s6 = scalar_lea.vmem %s1, 8
  %7 = vst [vmem:[%s6] sm:$0xff] %v4

// kernel: tile.0
$region0: #{tile.0}
  %s0 = inlined_call_operand.vmem [shape: f32[16,16], index: 0, kind: input, shape index: {}]
  %s1 = inlined_call_operand.vmem [shape: f32[256,1], index: 1, kind: output, shape index: {}]
  %v2 = vld [vmem:[%s0] sm:$0xff]
  %vm3 = vcmask 7168
  %4 = vst.msk [vmem:[%s1] ss:$16 sm:$0x3] %vm3, %v2
  %5 = vst.msk [vmem:[%s1] ss:$16 sm:$0xc] %vm3, %v2
  %6 = vst.msk [vmem:[%s1] ss:$16 sm:$0x30] %vm3, %v2
  %7 = vst.msk [vmem:[%s1] ss:$16 sm:$0xc0] %vm3, %v2
  %s8 = scalar_lea.vmem %s0, 8
  %v9 = vld [vmem:[%s8] sm:$0xff]
  %vm10 = vcmask 7168
  %s11 = scalar_lea.vmem %s1, 128
  %12 = vst.msk [vmem:[%s11] ss:$16 sm:$0x3] %vm10, %v9
  %s13 = scalar_lea.vmem %s1, 128
  %14 = vst.msk [vmem:[%s13] ss:$16 sm:$0xc] %vm10, %v9
  %s15 = scalar_lea.vmem %s1, 128
  %16 = vst.msk [vmem:[%s15] ss:$16 sm:$0x30] %vm10, %v9
  %s17 = scalar_lea.vmem %s1, 128
  %18 = vst.msk [vmem:[%s17] ss:$16 sm:$0xc0] %vm10, %v9
  %v19 = vld [vmem:[%s0] sm:$0xff]
  %20 = vrot.lane.b32.xlu0 %v19, 127
  %v21 = vpop.permute.xlu0 %20
  %vm22 = vcmask 7168
  %s23 = scalar_lea.vmem %s1, 1
  %24 = vst.msk [vmem:[%s23] ss:$16 sm:$0x3] %vm22, %v21
  %s25 = scalar_lea.vmem %s1, 1
  %26 = vst.msk [vmem:[%s25] ss:$16 sm:$0xc] %vm22, %v21
  %s27 = scalar_lea.vmem %s1, 1
  %28 = vst.msk [vmem:[%s27] ss:$16 sm:$0x30] %vm22, %v21
  %s29 = scalar_lea.vmem %s1, 1
  %30 = vst.msk [vmem:[%s29] ss:$16 sm:$0xc0] %vm22, %v21
  %s31 = scalar_lea.vmem %s0, 8
  %v32 = vld [vmem:[%s31] sm:$0xff]
  %33 = vrot.lane.b32.xlu0 %v32, 127
  %v34 = vpop.permute.xlu0 %33
  %vm35 = vcmask 7168
  %s36 = scalar_lea.vmem %s1, 129
  %37 = vst.msk [vmem:[%s36] ss:$16 sm:$0x3] %vm35, %v34
  %s38 = scalar_lea.vmem %s1, 129
  %39 = vst.msk [vmem:[%s38] ss:$16 sm:$0xc] %vm35, %v34
  %s40 = scalar_lea.vmem %s1, 129
  %41 = vst.msk [vmem:[%s40] ss:$16 sm:$0x30] %vm35, %v34
  %s42 = scalar_lea.vmem %s1, 129
  %43 = vst.msk [vmem:[%s42] ss:$16 sm:$0xc0] %vm35, %v34
  %v44 = vld [vmem:[%s0] sm:$0xff]
  %45 = vrot.lane.b32.xlu0 %v44, 126
  %v46 = vpop.permute.xlu0 %45
  %vm47 = vcmask 7168
  %s48 = scalar_lea.vmem %s1, 2
  %49 = vst.msk [vmem:[%s48] ss:$16 sm:$0x3] %vm47, %v46
  %s50 = scalar_lea.vmem %s1, 2
  %51 = vst.msk [vmem:[%s50] ss:$16 sm:$0xc] %vm47, %v46
  %s52 = scalar_lea.vmem %s1, 2
  %53 = vst.msk [vmem:[%s52] ss:$16 sm:$0x30] %vm47, %v46
  %s54 = scalar_lea.vmem %s1, 2
  %55 = vst.msk [vmem:[%s54] ss:$16 sm:$0xc0] %vm47, %v46
  %s56 = scalar_lea.vmem %s0, 8
  %v57 = vld [vmem:[%s56] sm:$0xff]
  %58 = vrot.lane.b32.xlu0 %v57, 126
  %v59 = vpop.permute.xlu0 %58
  %vm60 = vcmask 7168
  %s61 = scalar_lea.vmem %s1, 130
  %62 = vst.msk [vmem:[%s61] ss:$16 sm:$0x3] %vm60, %v59
  %s63 = scalar_lea.vmem %s1, 130
  %64 = vst.msk [vmem:[%s63] ss:$16 sm:$0xc] %vm60, %v59
  %s65 = scalar_lea.vmem %s1, 130
  %66 = vst.msk [vmem:[%s65] ss:$16 sm:$0x30] %vm60, %v59
  %s67 = scalar_lea.vmem %s1, 130
  %68 = vst.msk [vmem:[%s67] ss:$16 sm:$0xc0] %vm60, %v59
  %v69 = vld [vmem:[%s0] sm:$0xff]
  %70 = vrot.lane.b32.xlu0 %v69, 125
  %v71 = vpop.permute.xlu0 %70
  %vm72 = vcmask 7168
  %s73 = scalar_lea.vmem %s1, 3
  %74 = vst.msk [vmem:[%s73] ss:$16 sm:$0x3] %vm72, %v71
  %s75 = scalar_lea.vmem %s1, 3
  %76 = vst.msk [vmem:[%s75] ss:$16 sm:$0xc] %vm72, %v71
  %s77 = scalar_lea.vmem %s1, 3
  %78 = vst.msk [vmem:[%s77] ss:$16 sm:$0x30] %vm72, %v71
  %s79 = scalar_lea.vmem %s1, 3
  %80 = vst.msk [vmem:[%s79] ss:$16 sm:$0xc0] %vm72, %v71
  %s81 = scalar_lea.vmem %s0, 8
  %v82 = vld [vmem:[%s81] sm:$0xff]
  %83 = vrot.lane.b32.xlu0 %v82, 125
  %v84 = vpop.permute.xlu0 %83
  %vm85 = vcmask 7168
  %s86 = scalar_lea.vmem %s1, 131
  %87 = vst.msk [vmem:[%s86] ss:$16 sm:$0x3] %vm85, %v84
  %s88 = scalar_lea.vmem %s1, 131
  %89 = vst.msk [vmem:[%s88] ss:$16 sm:$0xc] %vm85, %v84
  %s90 = scalar_lea.vmem %s1, 131
  %91 = vst.msk [vmem:[%s90] ss:$16 sm:$0x30] %vm85, %v84
  %s92 = scalar_lea.vmem %s1, 131
  %93 = vst.msk [vmem:[%s92] ss:$16 sm:$0xc0] %vm85, %v84
  %v94 = vld [vmem:[%s0] sm:$0xff]
  %95 = vrot.lane.b32.xlu0 %v94, 124
  %v96 = vpop.permute.xlu0 %95
  %vm97 = vcmask 7168
  %s98 = scalar_lea.vmem %s1, 4
  %99 = vst.msk [vmem:[%s98] ss:$16 sm:$0x3] %vm97, %v96
  %s100 = scalar_lea.vmem %s1, 4
  %101 = vst.msk [vmem:[%s100] ss:$16 sm:$0xc] %vm97, %v96
  %s102 = scalar_lea.vmem %s1, 4
  %103 = vst.msk [vmem:[%s102] ss:$16 sm:$0x30] %vm97, %v96
  %s104 = scalar_lea.vmem %s1, 4
  %105 = vst.msk [vmem:[%s104] ss:$16 sm:$0xc0] %vm97, %v96
  %s106 = scalar_lea.vmem %s0, 8
  %v107 = vld [vmem:[%s106] sm:$0xff]
  %108 = vrot.lane.b32.xlu0 %v107, 124
  %v109 = vpop.permute.xlu0 %108
  %vm110 = vcmask 7168
  %s111 = scalar_lea.vmem %s1, 132
  %112 = vst.msk [vmem:[%s111] ss:$16 sm:$0x3] %vm110, %v109
  %s113 = scalar_lea.vmem %s1, 132
  %114 = vst.msk [vmem:[%s113] ss:$16 sm:$0xc] %vm110, %v109
  %s115 = scalar_lea.vmem %s1, 132
  %116 = vst.msk [vmem:[%s115] ss:$16 sm:$0x30] %vm110, %v109
  %s117 = scalar_lea.vmem %s1, 132
  %118 = vst.msk [vmem:[%s117] ss:$16 sm:$0xc0] %vm110, %v109
  %v119 = vld [vmem:[%s0] sm:$0xff]
  %120 = vrot.lane.b32.xlu0 %v119, 123
  %v121 = vpop.permute.xlu0 %120
  %vm122 = vcmask 7168
  %s123 = scalar_lea.vmem %s1, 5
  %124 = vst.msk [vmem:[%s123] ss:$16 sm:$0x3] %vm122, %v121
  %s125 = scalar_lea.vmem %s1, 5
  %126 = vst.msk [vmem:[%s125] ss:$16 sm:$0xc] %vm122, %v121
  %s127 = scalar_lea.vmem %s1, 5
  %128 = vst.msk [vmem:[%s127] ss:$16 sm:$0x30] %vm122, %v121
  %s129 = scalar_lea.vmem %s1, 5
  %130 = vst.msk [vmem:[%s129] ss:$16 sm:$0xc0] %vm122, %v121
  %s131 = scalar_lea.vmem %s0, 8
  %v132 = vld [vmem:[%s131] sm:$0xff]
  %133 = vrot.lane.b32.xlu0 %v132, 123
  %v134 = vpop.permute.xlu0 %133
  %vm135 = vcmask 7168
  %s136 = scalar_lea.vmem %s1, 133
  %137 = vst.msk [vmem:[%s136] ss:$16 sm:$0x3] %vm135, %v134
  %s138 = scalar_lea.vmem %s1, 133
  %139 = vst.msk [vmem:[%s138] ss:$16 sm:$0xc] %vm135, %v134
  %s140 = scalar_lea.vmem %s1, 133
  %141 = vst.msk [vmem:[%s140] ss:$16 sm:$0x30] %vm135, %v134
  %s142 = scalar_lea.vmem %s1, 133
  %143 = vst.msk [vmem:[%s142] ss:$16 sm:$0xc0] %vm135, %v134
  %v144 = vld [vmem:[%s0] sm:$0xff]
  %145 = vrot.lane.b32.xlu0 %v144, 122
  %v146 = vpop.permute.xlu0 %145
  %vm147 = vcmask 7168
  %s148 = scalar_lea.vmem %s1, 6
  %149 = vst.msk [vmem:[%s148] ss:$16 sm:$0x3] %vm147, %v146
  %s150 = scalar_lea.vmem %s1, 6
  %151 = vst.msk [vmem:[%s150] ss:$16 sm:$0xc] %vm147, %v146
  %s152 = scalar_lea.vmem %s1, 6
  %153 = vst.msk [vmem:[%s152] ss:$16 sm:$0x30] %vm147, %v146
  %s154 = scalar_lea.vmem %s1, 6
  %155 = vst.msk [vmem:[%s154] ss:$16 sm:$0xc0] %vm147, %v146
  %s156 = scalar_lea.vmem %s0, 8
  %v157 = vld [vmem:[%s156] sm:$0xff]
  %158 = vrot.lane.b32.xlu0 %v157, 122
  %v159 = vpop.permute.xlu0 %158
  %vm160 = vcmask 7168
  %s161 = scalar_lea.vmem %s1, 134
  %162 = vst.msk [vmem:[%s161] ss:$16 sm:$0x3] %vm160, %v159
  %s163 = scalar_lea.vmem %s1, 134
  %164 = vst.msk [vmem:[%s163] ss:$16 sm:$0xc] %vm160, %v159
  %s165 = scalar_lea.vmem %s1, 134
  %166 = vst.msk [vmem:[%s165] ss:$16 sm:$0x30] %vm160, %v159
  %s167 = scalar_lea.vmem %s1, 134
  %168 = vst.msk [vmem:[%s167] ss:$16 sm:$0xc0] %vm160, %v159
  %v169 = vld [vmem:[%s0] sm:$0xff]
  %170 = vrot.lane.b32.xlu0 %v169, 121
  %v171 = vpop.permute.xlu0 %170
  %vm172 = vcmask 7168
  %s173 = scalar_lea.vmem %s1, 7
  %174 = vst.msk [vmem:[%s173] ss:$16 sm:$0x3] %vm172, %v171
  %s175 = scalar_lea.vmem %s1, 7
  %176 = vst.msk [vmem:[%s175] ss:$16 sm:$0xc] %vm172, %v171
  %s177 = scalar_lea.vmem %s1, 7
  %178 = vst.msk [vmem:[%s177] ss:$16 sm:$0x30] %vm172, %v171
  %s179 = scalar_lea.vmem %s1, 7
  %180 = vst.msk [vmem:[%s179] ss:$16 sm:$0xc0] %vm172, %v171
  %s181 = scalar_lea.vmem %s0, 8
  %v182 = vld [vmem:[%s181] sm:$0xff]
  %183 = vrot.lane.b32.xlu0 %v182, 121
  %v184 = vpop.permute.xlu0 %183
  %vm185 = vcmask 7168
  %s186 = scalar_lea.vmem %s1, 135
  %187 = vst.msk [vmem:[%s186] ss:$16 sm:$0x3] %vm185, %v184
  %s188 = scalar_lea.vmem %s1, 135
  %189 = vst.msk [vmem:[%s188] ss:$16 sm:$0xc] %vm185, %v184
  %s190 = scalar_lea.vmem %s1, 135
  %191 = vst.msk [vmem:[%s190] ss:$16 sm:$0x30] %vm185, %v184
  %s192 = scalar_lea.vmem %s1, 135
  %193 = vst.msk [vmem:[%s192] ss:$16 sm:$0xc0] %vm185, %v184
  %v194 = vld [vmem:[%s0] sm:$0xff]
  %195 = vrot.lane.b32.xlu0 %v194, 120
  %v196 = vpop.permute.xlu0 %195
  %vm197 = vcmask 7168
  %s198 = scalar_lea.vmem %s1, 8
  %199 = vst.msk [vmem:[%s198] ss:$16 sm:$0x3] %vm197, %v196
  %s200 = scalar_lea.vmem %s1, 8
  %201 = vst.msk [vmem:[%s200] ss:$16 sm:$0xc] %vm197, %v196
  %s202 = scalar_lea.vmem %s1, 8
  %203 = vst.msk [vmem:[%s202] ss:$16 sm:$0x30] %vm197, %v196
  %s204 = scalar_lea.vmem %s1, 8
  %205 = vst.msk [vmem:[%s204] ss:$16 sm:$0xc0] %vm197, %v196
  %s206 = scalar_lea.vmem %s0, 8
  %v207 = vld [vmem:[%s206] sm:$0xff]
  %208 = vrot.lane.b32.xlu0 %v207, 120
  %v209 = vpop.permute.xlu0 %208
  %vm210 = vcmask 7168
  %s211 = scalar_lea.vmem %s1, 136
  %212 = vst.msk [vmem:[%s211] ss:$16 sm:$0x3] %vm210, %v209
  %s213 = scalar_lea.vmem %s1, 136
  %214 = vst.msk [vmem:[%s213] ss:$16 sm:$0xc] %vm210, %v209
  %s215 = scalar_lea.vmem %s1, 136
  %216 = vst.msk [vmem:[%s215] ss:$16 sm:$0x30] %vm210, %v209
  %s217 = scalar_lea.vmem %s1, 136
  %218 = vst.msk [vmem:[%s217] ss:$16 sm:$0xc0] %vm210, %v209
  %v219 = vld [vmem:[%s0] sm:$0xff]
  %220 = vrot.lane.b32.xlu0 %v219, 119
  %v221 = vpop.permute.xlu0 %220
  %vm222 = vcmask 7168
  %s223 = scalar_lea.vmem %s1, 9
  %224 = vst.msk [vmem:[%s223] ss:$16 sm:$0x3] %vm222, %v221
  %s225 = scalar_lea.vmem %s1, 9
  %226 = vst.msk [vmem:[%s225] ss:$16 sm:$0xc] %vm222, %v221
  %s227 = scalar_lea.vmem %s1, 9
  %228 = vst.msk [vmem:[%s227] ss:$16 sm:$0x30] %vm222, %v221
  %s229 = scalar_lea.vmem %s1, 9
  %230 = vst.msk [vmem:[%s229] ss:$16 sm:$0xc0] %vm222, %v221
  %s231 = scalar_lea.vmem %s0, 8
  %v232 = vld [vmem:[%s231] sm:$0xff]
  %233 = vrot.lane.b32.xlu0 %v232, 119
  %v234 = vpop.permute.xlu0 %233
  %vm235 = vcmask 7168
  %s236 = scalar_lea.vmem %s1, 137
  %237 = vst.msk [vmem:[%s236] ss:$16 sm:$0x3] %vm235, %v234
  %s238 = scalar_lea.vmem %s1, 137
  %239 = vst.msk [vmem:[%s238] ss:$16 sm:$0xc] %vm235, %v234
  %s240 = scalar_lea.vmem %s1, 137
  %241 = vst.msk [vmem:[%s240] ss:$16 sm:$0x30] %vm235, %v234
  %s242 = scalar_lea.vmem %s1, 137
  %243 = vst.msk [vmem:[%s242] ss:$16 sm:$0xc0] %vm235, %v234
  %v244 = vld [vmem:[%s0] sm:$0xff]
  %245 = vrot.lane.b32.xlu0 %v244, 118
  %v246 = vpop.permute.xlu0 %245
  %vm247 = vcmask 7168
  %s248 = scalar_lea.vmem %s1, 10
  %249 = vst.msk [vmem:[%s248] ss:$16 sm:$0x3] %vm247, %v246
  %s250 = scalar_lea.vmem %s1, 10
  %251 = vst.msk [vmem:[%s250] ss:$16 sm:$0xc] %vm247, %v246
  %s252 = scalar_lea.vmem %s1, 10
  %253 = vst.msk [vmem:[%s252] ss:$16 sm:$0x30] %vm247, %v246
  %s254 = scalar_lea.vmem %s1, 10
  %255 = vst.msk [vmem:[%s254] ss:$16 sm:$0xc0] %vm247, %v246
  %s256 = scalar_lea.vmem %s0, 8
  %v257 = vld [vmem:[%s256] sm:$0xff]
  %258 = vrot.lane.b32.xlu0 %v257, 118
  %v259 = vpop.permute.xlu0 %258
  %vm260 = vcmask 7168
  %s261 = scalar_lea.vmem %s1, 138
  %262 = vst.msk [vmem:[%s261] ss:$16 sm:$0x3] %vm260, %v259
  %s263 = scalar_lea.vmem %s1, 138
  %264 = vst.msk [vmem:[%s263] ss:$16 sm:$0xc] %vm260, %v259
  %s265 = scalar_lea.vmem %s1, 138
  %266 = vst.msk [vmem:[%s265] ss:$16 sm:$0x30] %vm260, %v259
  %s267 = scalar_lea.vmem %s1, 138
  %268 = vst.msk [vmem:[%s267] ss:$16 sm:$0xc0] %vm260, %v259
  %v269 = vld [vmem:[%s0] sm:$0xff]
  %270 = vrot.lane.b32.xlu0 %v269, 117
  %v271 = vpop.permute.xlu0 %270
  %vm272 = vcmask 7168
  %s273 = scalar_lea.vmem %s1, 11
  %274 = vst.msk [vmem:[%s273] ss:$16 sm:$0x3] %vm272, %v271
  %s275 = scalar_lea.vmem %s1, 11
  %276 = vst.msk [vmem:[%s275] ss:$16 sm:$0xc] %vm272, %v271
  %s277 = scalar_lea.vmem %s1, 11
  %278 = vst.msk [vmem:[%s277] ss:$16 sm:$0x30] %vm272, %v271
  %s279 = scalar_lea.vmem %s1, 11
  %280 = vst.msk [vmem:[%s279] ss:$16 sm:$0xc0] %vm272, %v271
  %s281 = scalar_lea.vmem %s0, 8
  %v282 = vld [vmem:[%s281] sm:$0xff]
  %283 = vrot.lane.b32.xlu0 %v282, 117
  %v284 = vpop.permute.xlu0 %283
  %vm285 = vcmask 7168
  %s286 = scalar_lea.vmem %s1, 139
  %287 = vst.msk [vmem:[%s286] ss:$16 sm:$0x3] %vm285, %v284
  %s288 = scalar_lea.vmem %s1, 139
  %289 = vst.msk [vmem:[%s288] ss:$16 sm:$0xc] %vm285, %v284
  %s290 = scalar_lea.vmem %s1, 139
  %291 = vst.msk [vmem:[%s290] ss:$16 sm:$0x30] %vm285, %v284
  %s292 = scalar_lea.vmem %s1, 139
  %293 = vst.msk [vmem:[%s292] ss:$16 sm:$0xc0] %vm285, %v284
  %v294 = vld [vmem:[%s0] sm:$0xff]
  %295 = vrot.lane.b32.xlu0 %v294, 116
  %v296 = vpop.permute.xlu0 %295
  %vm297 = vcmask 7168
  %s298 = scalar_lea.vmem %s1, 12
  %299 = vst.msk [vmem:[%s298] ss:$16 sm:$0x3] %vm297, %v296
  %s300 = scalar_lea.vmem %s1, 12
  %301 = vst.msk [vmem:[%s300] ss:$16 sm:$0xc] %vm297, %v296
  %s302 = scalar_lea.vmem %s1, 12
  %303 = vst.msk [vmem:[%s302] ss:$16 sm:$0x30] %vm297, %v296
  %s304 = scalar_lea.vmem %s1, 12
  %305 = vst.msk [vmem:[%s304] ss:$16 sm:$0xc0] %vm297, %v296
  %s306 = scalar_lea.vmem %s0, 8
  %v307 = vld [vmem:[%s306] sm:$0xff]
  %308 = vrot.lane.b32.xlu0 %v307, 116
  %v309 = vpop.permute.xlu0 %308
  %vm310 = vcmask 7168
  %s311 = scalar_lea.vmem %s1, 140
  %312 = vst.msk [vmem:[%s311] ss:$16 sm:$0x3] %vm310, %v309
  %s313 = scalar_lea.vmem %s1, 140
  %314 = vst.msk [vmem:[%s313] ss:$16 sm:$0xc] %vm310, %v309
  %s315 = scalar_lea.vmem %s1, 140
  %316 = vst.msk [vmem:[%s315] ss:$16 sm:$0x30] %vm310, %v309
  %s317 = scalar_lea.vmem %s1, 140
  %318 = vst.msk [vmem:[%s317] ss:$16 sm:$0xc0] %vm310, %v309
  %v319 = vld [vmem:[%s0] sm:$0xff]
  %320 = vrot.lane.b32.xlu0 %v319, 115
  %v321 = vpop.permute.xlu0 %320
  %vm322 = vcmask 7168
  %s323 = scalar_lea.vmem %s1, 13
  %324 = vst.msk [vmem:[%s323] ss:$16 sm:$0x3] %vm322, %v321
  %s325 = scalar_lea.vmem %s1, 13
  %326 = vst.msk [vmem:[%s325] ss:$16 sm:$0xc] %vm322, %v321
  %s327 = scalar_lea.vmem %s1, 13
  %328 = vst.msk [vmem:[%s327] ss:$16 sm:$0x30] %vm322, %v321
  %s329 = scalar_lea.vmem %s1, 13
  %330 = vst.msk [vmem:[%s329] ss:$16 sm:$0xc0] %vm322, %v321
  %s331 = scalar_lea.vmem %s0, 8
  %v332 = vld [vmem:[%s331] sm:$0xff]
  %333 = vrot.lane.b32.xlu0 %v332, 115
  %v334 = vpop.permute.xlu0 %333
  %vm335 = vcmask 7168
  %s336 = scalar_lea.vmem %s1, 141
  %337 = vst.msk [vmem:[%s336] ss:$16 sm:$0x3] %vm335, %v334
  %s338 = scalar_lea.vmem %s1, 141
  %339 = vst.msk [vmem:[%s338] ss:$16 sm:$0xc] %vm335, %v334
  %s340 = scalar_lea.vmem %s1, 141
  %341 = vst.msk [vmem:[%s340] ss:$16 sm:$0x30] %vm335, %v334
  %s342 = scalar_lea.vmem %s1, 141
  %343 = vst.msk [vmem:[%s342] ss:$16 sm:$0xc0] %vm335, %v334
  %v344 = vld [vmem:[%s0] sm:$0xff]
  %345 = vrot.lane.b32.xlu0 %v344, 114
  %v346 = vpop.permute.xlu0 %345
  %vm347 = vcmask 7168
  %s348 = scalar_lea.vmem %s1, 14
  %349 = vst.msk [vmem:[%s348] ss:$16 sm:$0x3] %vm347, %v346
  %s350 = scalar_lea.vmem %s1, 14
  %351 = vst.msk [vmem:[%s350] ss:$16 sm:$0xc] %vm347, %v346
  %s352 = scalar_lea.vmem %s1, 14
  %353 = vst.msk [vmem:[%s352] ss:$16 sm:$0x30] %vm347, %v346
  %s354 = scalar_lea.vmem %s1, 14
  %355 = vst.msk [vmem:[%s354] ss:$16 sm:$0xc0] %vm347, %v346
  %s356 = scalar_lea.vmem %s0, 8
  %v357 = vld [vmem:[%s356] sm:$0xff]
  %358 = vrot.lane.b32.xlu0 %v357, 114
  %v359 = vpop.permute.xlu0 %358
  %vm360 = vcmask 7168
  %s361 = scalar_lea.vmem %s1, 142
  %362 = vst.msk [vmem:[%s361] ss:$16 sm:$0x3] %vm360, %v359
  %s363 = scalar_lea.vmem %s1, 142
  %364 = vst.msk [vmem:[%s363] ss:$16 sm:$0xc] %vm360, %v359
  %s365 = scalar_lea.vmem %s1, 142
  %366 = vst.msk [vmem:[%s365] ss:$16 sm:$0x30] %vm360, %v359
  %s367 = scalar_lea.vmem %s1, 142
  %368 = vst.msk [vmem:[%s367] ss:$16 sm:$0xc0] %vm360, %v359
  %v369 = vld [vmem:[%s0] sm:$0xff]
  %370 = vrot.lane.b32.xlu0 %v369, 113
  %v371 = vpop.permute.xlu0 %370
  %vm372 = vcmask 7168
  %s373 = scalar_lea.vmem %s1, 15
  %374 = vst.msk [vmem:[%s373] ss:$16 sm:$0x3] %vm372, %v371
  %s375 = scalar_lea.vmem %s1, 15
  %376 = vst.msk [vmem:[%s375] ss:$16 sm:$0xc] %vm372, %v371
  %s377 = scalar_lea.vmem %s1, 15
  %378 = vst.msk [vmem:[%s377] ss:$16 sm:$0x30] %vm372, %v371
  %s379 = scalar_lea.vmem %s1, 15
  %380 = vst.msk [vmem:[%s379] ss:$16 sm:$0xc0] %vm372, %v371
  %s381 = scalar_lea.vmem %s0, 8
  %v382 = vld [vmem:[%s381] sm:$0xff]
  %383 = vrot.lane.b32.xlu0 %v382, 113
  %v384 = vpop.permute.xlu0 %383
  %vm385 = vcmask 7168
  %s386 = scalar_lea.vmem %s1, 143
  %387 = vst.msk [vmem:[%s386] ss:$16 sm:$0x3] %vm385, %v384
  %s388 = scalar_lea.vmem %s1, 143
  %389 = vst.msk [vmem:[%s388] ss:$16 sm:$0xc] %vm385, %v384
  %s390 = scalar_lea.vmem %s1, 143
  %391 = vst.msk [vmem:[%s390] ss:$16 sm:$0x30] %vm385, %v384
  %s392 = scalar_lea.vmem %s1, 143
  %393 = vst.msk [vmem:[%s392] ss:$16 sm:$0xc0] %vm385, %v384

// kernel: attention_mlp.1
$region0: #{attention_mlp.1}
  #allocation0 [shape = 'u32[]', space=smem, size = 0x4, offset = 0x4, fixed_abs, tag = 'smem constant byte address 0x4 - core index']
  #allocation1 [shape = 'u32[72,128]{1,0:T(1,128)}', space=vmem, size = 0x9000, scoped, tag = 'internal scratch']
  %s0 = inlined_call_operand.vmem [shape: f32[8,16], index: 0, kind: input, shape index: {}]
  %s1 = inlined_call_operand.vmem [shape: f32[8,128], index: 1, kind: input, shape index: {}]
  %s2 = inlined_call_operand.vmem [shape: f32[256,16], index: 2, kind: input, shape index: {}]
  %s3 = inlined_call_operand.vmem [shape: f32[256,128], index: 3, kind: input, shape index: {}]
  %s4 = inlined_call_operand.vmem [shape: f32[256,1], index: 4, kind: input, shape index: {}]
  %s5 = inlined_call_operand.vmem [shape: f32[256,1], index: 5, kind: input, shape index: {}]
  %s6 = inlined_call_operand.vmem [shape: f32[16,8], index: 6, kind: output, shape index: {}]
  %s7 = sld [smem:[#allocation0]]
  $region34: #{attention_mlp.1} parent=0
    _
  %s9 = ssub.s32 1, %s7
  %s10 = scalar_select 0, %s9, %s7
  // Predicated region
  $region2: #{attention_mlp.1} parent=0 // pred_check
    _
  $region3: #{attention_mlp.1} parent=0 // pred_check_branch
    %12 = sbr.rel (0) target = $region5
  $region4: #{attention_mlp.1} parent=0 // pred_region
    _
  $region5: #{attention_mlp.1} parent=0 // pred_fallthru
    _
  // Predicated region
  $region6: #{attention_mlp.1} parent=0 // pred_check
    _
  $region7: #{attention_mlp.1} parent=0 // pred_check_branch
    %14 = sbr.rel (0) target = $region9
  $region8: #{attention_mlp.1} parent=0 // pred_region
    _
  $region9: #{attention_mlp.1} parent=0 // pred_fallthru
    _
  // Predicated region
  $region10: #{attention_mlp.1} parent=0 // pred_check
    _
  $region11: #{attention_mlp.1} parent=0 // pred_check_branch
    %16 = sbr.rel (0) target = $region13
  $region12: #{attention_mlp.1} parent=0 // pred_region
    _
  $region13: #{attention_mlp.1} parent=0 // pred_fallthru
    _
  // Predicated region
  $region14: #{attention_mlp.1} parent=0 // pred_check
    _
  $region15: #{attention_mlp.1} parent=0 // pred_check_branch
    %18 = sbr.rel (0) target = $region17
  $region16: #{attention_mlp.1} parent=0 // pred_region
    _
  $region17: #{attention_mlp.1} parent=0 // pred_fallthru
    _
  // Predicated region
  $region18: #{attention_mlp.1} parent=0 // pred_check
    _
  $region19: #{attention_mlp.1} parent=0 // pred_check_branch
    %20 = sbr.rel (0) target = $region21
  $region20: #{attention_mlp.1} parent=0 // pred_region
    _
  $region21: #{attention_mlp.1} parent=0 // pred_fallthru
    _
  // Predicated region
  $region22: #{attention_mlp.1} parent=0 // pred_check
    _
  $region23: #{attention_mlp.1} parent=0 // pred_check_branch
    %22 = sbr.rel (0) target = $region25
  $region24: #{attention_mlp.1} parent=0 // pred_region
    _
  $region25: #{attention_mlp.1} parent=0 // pred_fallthru
    _
  %v23 = vld [vmem:[%s2] sm:$0xff]
  %v24 = vld [vmem:[%s2 + $0x8] sm:$0xff]
  %v25 = vld [vmem:[%s2 + $0x10] sm:$0xff]
  %v26 = vld [vmem:[%s2 + $0x18] sm:$0xff]
  %v27 = vld [vmem:[%s2 + $0x20] sm:$0xff]
  %v28 = vld [vmem:[%s2 + $0x28] sm:$0xff]
  %v29 = vld [vmem:[%s2 + $0x30] sm:$0xff]
  %v30 = vld [vmem:[%s2 + $0x38] sm:$0xff]
  %v31 = vld [vmem:[%s2 + $0x40] sm:$0xff]
  %v32 = vld [vmem:[%s2 + $0x48] sm:$0xff]
  %v33 = vld [vmem:[%s2 + $0x50] sm:$0xff]
  %v34 = vld [vmem:[%s2 + $0x58] sm:$0xff]
  %v35 = vld [vmem:[%s2 + $0x60] sm:$0xff]
  %v36 = vld [vmem:[%s2 + $0x68] sm:$0xff]
  %v37 = vld [vmem:[%s2 + $0x70] sm:$0xff]
  %v38 = vld [vmem:[%s2 + $0x78] sm:$0xff]
  %v39 = vld [vmem:[%s2 + $0x80] sm:$0xff]
  %v40 = vld [vmem:[%s2 + $0x88] sm:$0xff]
  %v41 = vld [vmem:[%s2 + $0x90] sm:$0xff]
  %v42 = vld [vmem:[%s2 + $0x98] sm:$0xff]
  %v43 = vld [vmem:[%s2 + $0xa0] sm:$0xff]
  %v44 = vld [vmem:[%s2 + $0xa8] sm:$0xff]
  %v45 = vld [vmem:[%s2 + $0xb0] sm:$0xff]
  %v46 = vld [vmem:[%s2 + $0xb8] sm:$0xff]
  %v47 = vld [vmem:[%s2 + $0xc0] sm:$0xff]
  %v48 = vld [vmem:[%s2 + $0xc8] sm:$0xff]
  %v49 = vld [vmem:[%s2 + $0xd0] sm:$0xff]
  %v50 = vld [vmem:[%s2 + $0xd8] sm:$0xff]
  %v51 = vld [vmem:[%s2 + $0xe0] sm:$0xff]
  %v52 = vld [vmem:[%s2 + $0xe8] sm:$0xff]
  %v53 = vld [vmem:[%s2 + $0xf0] sm:$0xff]
  %v54 = vld [vmem:[%s2 + $0xf8] sm:$0xff]
  %v55 = vld [vmem:[%s3] sm:$0xff]
  %v56 = vld [vmem:[%s3 + $0x8] sm:$0xff]
  %v57 = vld [vmem:[%s3 + $0x10] sm:$0xff]
  %v58 = vld [vmem:[%s3 + $0x18] sm:$0xff]
  %v59 = vld [vmem:[%s3 + $0x20] sm:$0xff]
  %v60 = vld [vmem:[%s3 + $0x28] sm:$0xff]
  %v61 = vld [vmem:[%s3 + $0x30] sm:$0xff]
  %v62 = vld [vmem:[%s3 + $0x38] sm:$0xff]
  %v63 = vld [vmem:[%s3 + $0x40] sm:$0xff]
  %v64 = vld [vmem:[%s3 + $0x48] sm:$0xff]
  %v65 = vld [vmem:[%s3 + $0x50] sm:$0xff]
  %v66 = vld [vmem:[%s3 + $0x58] sm:$0xff]
  %v67 = vld [vmem:[%s3 + $0x60] sm:$0xff]
  %v68 = vld [vmem:[%s3 + $0x68] sm:$0xff]
  %v69 = vld [vmem:[%s3 + $0x70] sm:$0xff]
  %v70 = vld [vmem:[%s3 + $0x78] sm:$0xff]
  %v71 = vld [vmem:[%s3 + $0x80] sm:$0xff]
  %v72 = vld [vmem:[%s3 + $0x88] sm:$0xff]
  %v73 = vld [vmem:[%s3 + $0x90] sm:$0xff]
  %v74 = vld [vmem:[%s3 + $0x98] sm:$0xff]
  %v75 = vld [vmem:[%s3 + $0xa0] sm:$0xff]
  %v76 = vld [vmem:[%s3 + $0xa8] sm:$0xff]
  %v77 = vld [vmem:[%s3 + $0xb0] sm:$0xff]
  %v78 = vld [vmem:[%s3 + $0xb8] sm:$0xff]
  %v79 = vld [vmem:[%s3 + $0xc0] sm:$0xff]
  %v80 = vld [vmem:[%s3 + $0xc8] sm:$0xff]
  %v81 = vld [vmem:[%s3 + $0xd0] sm:$0xff]
  %v82 = vld [vmem:[%s3 + $0xd8] sm:$0xff]
  %v83 = vld [vmem:[%s3 + $0xe0] sm:$0xff]
  %v84 = vld [vmem:[%s3 + $0xe8] sm:$0xff]
  %v85 = vld [vmem:[%s3 + $0xf0] sm:$0xff]
  %v86 = vld [vmem:[%s3 + $0xf8] sm:$0xff]
  %v87 = vld [vmem:[%s4] sm:$0xff]
  %v88 = vld [vmem:[%s4 + $0x8] sm:$0xff]
  %v89 = vld [vmem:[%s4 + $0x10] sm:$0xff]
  %v90 = vld [vmem:[%s4 + $0x18] sm:$0xff]
  %v91 = vld [vmem:[%s4 + $0x20] sm:$0xff]
  %v92 = vld [vmem:[%s4 + $0x28] sm:$0xff]
  %v93 = vld [vmem:[%s4 + $0x30] sm:$0xff]
  %v94 = vld [vmem:[%s4 + $0x38] sm:$0xff]
  %v95 = vld [vmem:[%s4 + $0x40] sm:$0xff]
  %v96 = vld [vmem:[%s4 + $0x48] sm:$0xff]
  %v97 = vld [vmem:[%s4 + $0x50] sm:$0xff]
  %v98 = vld [vmem:[%s4 + $0x58] sm:$0xff]
  %v99 = vld [vmem:[%s4 + $0x60] sm:$0xff]
  %v100 = vld [vmem:[%s4 + $0x68] sm:$0xff]
  %v101 = vld [vmem:[%s4 + $0x70] sm:$0xff]
  %v102 = vld [vmem:[%s4 + $0x78] sm:$0xff]
  %v103 = vld [vmem:[%s4 + $0x80] sm:$0xff]
  %v104 = vld [vmem:[%s4 + $0x88] sm:$0xff]
  %v105 = vld [vmem:[%s4 + $0x90] sm:$0xff]
  %v106 = vld [vmem:[%s4 + $0x98] sm:$0xff]
  %v107 = vld [vmem:[%s4 + $0xa0] sm:$0xff]
  %v108 = vld [vmem:[%s4 + $0xa8] sm:$0xff]
  %v109 = vld [vmem:[%s4 + $0xb0] sm:$0xff]
  %v110 = vld [vmem:[%s4 + $0xb8] sm:$0xff]
  %v111 = vld [vmem:[%s4 + $0xc0] sm:$0xff]
  %v112 = vld [vmem:[%s4 + $0xc8] sm:$0xff]
  %v113 = vld [vmem:[%s4 + $0xd0] sm:$0xff]
  %v114 = vld [vmem:[%s4 + $0xd8] sm:$0xff]
  %v115 = vld [vmem:[%s4 + $0xe0] sm:$0xff]
  %v116 = vld [vmem:[%s4 + $0xe8] sm:$0xff]
  %v117 = vld [vmem:[%s4 + $0xf0] sm:$0xff]
  %v118 = vld [vmem:[%s4 + $0xf8] sm:$0xff]
  %120 = vset.pattern.permute.xlu0 0
  %121 = vperm.xlu0 %120, %v87
  %v122 = vpop.permute.xlu0 %121
  %125 = vset.pattern.permute.xlu0 0
  %126 = vperm.xlu0 %125, %v88
  %v127 = vpop.permute.xlu0 %126
  %130 = vset.pattern.permute.xlu0 0
  %131 = vperm.xlu0 %130, %v89
  %v132 = vpop.permute.xlu0 %131
  %135 = vset.pattern.permute.xlu0 0
  %136 = vperm.xlu0 %135, %v90
  %v137 = vpop.permute.xlu0 %136
  %140 = vset.pattern.permute.xlu0 0
  %141 = vperm.xlu0 %140, %v91
  %v142 = vpop.permute.xlu0 %141
  %145 = vset.pattern.permute.xlu0 0
  %146 = vperm.xlu0 %145, %v92
  %v147 = vpop.permute.xlu0 %146
  %150 = vset.pattern.permute.xlu0 0
  %151 = vperm.xlu0 %150, %v93
  %v152 = vpop.permute.xlu0 %151
  %155 = vset.pattern.permute.xlu0 0
  %156 = vperm.xlu0 %155, %v94
  %v157 = vpop.permute.xlu0 %156
  %160 = vset.pattern.permute.xlu0 0
  %161 = vperm.xlu0 %160, %v95
  %v162 = vpop.permute.xlu0 %161
  %165 = vset.pattern.permute.xlu0 0
  %166 = vperm.xlu0 %165, %v96
  %v167 = vpop.permute.xlu0 %166
  %170 = vset.pattern.permute.xlu0 0
  %171 = vperm.xlu0 %170, %v97
  %v172 = vpop.permute.xlu0 %171
  %175 = vset.pattern.permute.xlu0 0
  %176 = vperm.xlu0 %175, %v98
  %v177 = vpop.permute.xlu0 %176
  %180 = vset.pattern.permute.xlu0 0
  %181 = vperm.xlu0 %180, %v99
  %v182 = vpop.permute.xlu0 %181
  %185 = vset.pattern.permute.xlu0 0
  %186 = vperm.xlu0 %185, %v100
  %v187 = vpop.permute.xlu0 %186
  %190 = vset.pattern.permute.xlu0 0
  %191 = vperm.xlu0 %190, %v101
  %v192 = vpop.permute.xlu0 %191
  %195 = vset.pattern.permute.xlu0 0
  %196 = vperm.xlu0 %195, %v102
  %v197 = vpop.permute.xlu0 %196
  %200 = vset.pattern.permute.xlu0 0
  %201 = vperm.xlu0 %200, %v103
  %v202 = vpop.permute.xlu0 %201
  %205 = vset.pattern.permute.xlu0 0
  %206 = vperm.xlu0 %205, %v104
  %v207 = vpop.permute.xlu0 %206
  %210 = vset.pattern.permute.xlu0 0
  %211 = vperm.xlu0 %210, %v105
  %v212 = vpop.permute.xlu0 %211
  %215 = vset.pattern.permute.xlu0 0
  %216 = vperm.xlu0 %215, %v106
  %v217 = vpop.permute.xlu0 %216
  %220 = vset.pattern.permute.xlu0 0
  %221 = vperm.xlu0 %220, %v107
  %v222 = vpop.permute.xlu0 %221
  %225 = vset.pattern.permute.xlu0 0
  %226 = vperm.xlu0 %225, %v108
  %v227 = vpop.permute.xlu0 %226
  %230 = vset.pattern.permute.xlu0 0
  %231 = vperm.xlu0 %230, %v109
  %v232 = vpop.permute.xlu0 %231
  %235 = vset.pattern.permute.xlu0 0
  %236 = vperm.xlu0 %235, %v110
  %v237 = vpop.permute.xlu0 %236
  %240 = vset.pattern.permute.xlu0 0
  %241 = vperm.xlu0 %240, %v111
  %v242 = vpop.permute.xlu0 %241
  %245 = vset.pattern.permute.xlu0 0
  %246 = vperm.xlu0 %245, %v112
  %v247 = vpop.permute.xlu0 %246
  %250 = vset.pattern.permute.xlu0 0
  %251 = vperm.xlu0 %250, %v113
  %v252 = vpop.permute.xlu0 %251
  %255 = vset.pattern.permute.xlu0 0
  %256 = vperm.xlu0 %255, %v114
  %v257 = vpop.permute.xlu0 %256
  %260 = vset.pattern.permute.xlu0 0
  %261 = vperm.xlu0 %260, %v115
  %v262 = vpop.permute.xlu0 %261
  %265 = vset.pattern.permute.xlu0 0
  %266 = vperm.xlu0 %265, %v116
  %v267 = vpop.permute.xlu0 %266
  %270 = vset.pattern.permute.xlu0 0
  %271 = vperm.xlu0 %270, %v117
  %v272 = vpop.permute.xlu0 %271
  %275 = vset.pattern.permute.xlu0 0
  %276 = vperm.xlu0 %275, %v118
  %v277 = vpop.permute.xlu0 %276
  %v279 = vld [vmem:[%s5] sm:$0xff]
  %v280 = vld [vmem:[%s5 + $0x8] sm:$0xff]
  %v281 = vld [vmem:[%s5 + $0x10] sm:$0xff]
  %v282 = vld [vmem:[%s5 + $0x18] sm:$0xff]
  %v283 = vld [vmem:[%s5 + $0x20] sm:$0xff]
  %v284 = vld [vmem:[%s5 + $0x28] sm:$0xff]
  %v285 = vld [vmem:[%s5 + $0x30] sm:$0xff]
  %v286 = vld [vmem:[%s5 + $0x38] sm:$0xff]
  %v287 = vld [vmem:[%s5 + $0x40] sm:$0xff]
  %v288 = vld [vmem:[%s5 + $0x48] sm:$0xff]
  %v289 = vld [vmem:[%s5 + $0x50] sm:$0xff]
  %v290 = vld [vmem:[%s5 + $0x58] sm:$0xff]
  %v291 = vld [vmem:[%s5 + $0x60] sm:$0xff]
  %v292 = vld [vmem:[%s5 + $0x68] sm:$0xff]
  %v293 = vld [vmem:[%s5 + $0x70] sm:$0xff]
  %v294 = vld [vmem:[%s5 + $0x78] sm:$0xff]
  %v295 = vld [vmem:[%s5 + $0x80] sm:$0xff]
  %v296 = vld [vmem:[%s5 + $0x88] sm:$0xff]
  %v297 = vld [vmem:[%s5 + $0x90] sm:$0xff]
  %v298 = vld [vmem:[%s5 + $0x98] sm:$0xff]
  %v299 = vld [vmem:[%s5 + $0xa0] sm:$0xff]
  %v300 = vld [vmem:[%s5 + $0xa8] sm:$0xff]
  %v301 = vld [vmem:[%s5 + $0xb0] sm:$0xff]
  %v302 = vld [vmem:[%s5 + $0xb8] sm:$0xff]
  %v303 = vld [vmem:[%s5 + $0xc0] sm:$0xff]
  %v304 = vld [vmem:[%s5 + $0xc8] sm:$0xff]
  %v305 = vld [vmem:[%s5 + $0xd0] sm:$0xff]
  %v306 = vld [vmem:[%s5 + $0xd8] sm:$0xff]
  %v307 = vld [vmem:[%s5 + $0xe0] sm:$0xff]
  %v308 = vld [vmem:[%s5 + $0xe8] sm:$0xff]
  %v309 = vld [vmem:[%s5 + $0xf0] sm:$0xff]
  %v310 = vld [vmem:[%s5 + $0xf8] sm:$0xff]
  %312 = vset.pattern.permute.xlu0 0
  %313 = vperm.xlu0 %312, %v279
  %v314 = vpop.permute.xlu0 %313
  %317 = vset.pattern.permute.xlu0 0
  %318 = vperm.xlu0 %317, %v280
  %v319 = vpop.permute.xlu0 %318
  %322 = vset.pattern.permute.xlu0 0
  %323 = vperm.xlu0 %322, %v281
  %v324 = vpop.permute.xlu0 %323
  %327 = vset.pattern.permute.xlu0 0
  %328 = vperm.xlu0 %327, %v282
  %v329 = vpop.permute.xlu0 %328
  %332 = vset.pattern.permute.xlu0 0
  %333 = vperm.xlu0 %332, %v283
  %v334 = vpop.permute.xlu0 %333
  %337 = vset.pattern.permute.xlu0 0
  %338 = vperm.xlu0 %337, %v284
  %v339 = vpop.permute.xlu0 %338
  %342 = vset.pattern.permute.xlu0 0
  %343 = vperm.xlu0 %342, %v285
  %v344 = vpop.permute.xlu0 %343
  %347 = vset.pattern.permute.xlu0 0
  %348 = vperm.xlu0 %347, %v286
  %v349 = vpop.permute.xlu0 %348
  %352 = vset.pattern.permute.xlu0 0
  %353 = vperm.xlu0 %352, %v287
  %v354 = vpop.permute.xlu0 %353
  %357 = vset.pattern.permute.xlu0 0
  %358 = vperm.xlu0 %357, %v288
  %v359 = vpop.permute.xlu0 %358
  %362 = vset.pattern.permute.xlu0 0
  %363 = vperm.xlu0 %362, %v289
  %v364 = vpop.permute.xlu0 %363
  %367 = vset.pattern.permute.xlu0 0
  %368 = vperm.xlu0 %367, %v290
  %v369 = vpop.permute.xlu0 %368
  %372 = vset.pattern.permute.xlu0 0
  %373 = vperm.xlu0 %372, %v291
  %v374 = vpop.permute.xlu0 %373
  %377 = vset.pattern.permute.xlu0 0
  %378 = vperm.xlu0 %377, %v292
  %v379 = vpop.permute.xlu0 %378
  %382 = vset.pattern.permute.xlu0 0
  %383 = vperm.xlu0 %382, %v293
  %v384 = vpop.permute.xlu0 %383
  %387 = vset.pattern.permute.xlu0 0
  %388 = vperm.xlu0 %387, %v294
  %v389 = vpop.permute.xlu0 %388
  %392 = vset.pattern.permute.xlu0 0
  %393 = vperm.xlu0 %392, %v295
  %v394 = vpop.permute.xlu0 %393
  %397 = vset.pattern.permute.xlu0 0
  %398 = vperm.xlu0 %397, %v296
  %v399 = vpop.permute.xlu0 %398
  %402 = vset.pattern.permute.xlu0 0
  %403 = vperm.xlu0 %402, %v297
  %v404 = vpop.permute.xlu0 %403
  %407 = vset.pattern.permute.xlu0 0
  %408 = vperm.xlu0 %407, %v298
  %v409 = vpop.permute.xlu0 %408
  %412 = vset.pattern.permute.xlu0 0
  %413 = vperm.xlu0 %412, %v299
  %v414 = vpop.permute.xlu0 %413
  %417 = vset.pattern.permute.xlu0 0
  %418 = vperm.xlu0 %417, %v300
  %v419 = vpop.permute.xlu0 %418
  %422 = vset.pattern.permute.xlu0 0
  %423 = vperm.xlu0 %422, %v301
  %v424 = vpop.permute.xlu0 %423
  %427 = vset.pattern.permute.xlu0 0
  %428 = vperm.xlu0 %427, %v302
  %v429 = vpop.permute.xlu0 %428
  %432 = vset.pattern.permute.xlu0 0
  %433 = vperm.xlu0 %432, %v303
  %v434 = vpop.permute.xlu0 %433
  %437 = vset.pattern.permute.xlu0 0
  %438 = vperm.xlu0 %437, %v304
  %v439 = vpop.permute.xlu0 %438
  %442 = vset.pattern.permute.xlu0 0
  %443 = vperm.xlu0 %442, %v305
  %v444 = vpop.permute.xlu0 %443
  %447 = vset.pattern.permute.xlu0 0
  %448 = vperm.xlu0 %447, %v306
  %v449 = vpop.permute.xlu0 %448
  %452 = vset.pattern.permute.xlu0 0
  %453 = vperm.xlu0 %452, %v307
  %v454 = vpop.permute.xlu0 %453
  %457 = vset.pattern.permute.xlu0 0
  %458 = vperm.xlu0 %457, %v308
  %v459 = vpop.permute.xlu0 %458
  %462 = vset.pattern.permute.xlu0 0
  %463 = vperm.xlu0 %462, %v309
  %v464 = vpop.permute.xlu0 %463
  %467 = vset.pattern.permute.xlu0 0
  %468 = vperm.xlu0 %467, %v310
  %v469 = vpop.permute.xlu0 %468
  %v471 = vld [vmem:[%s0] sm:$0xff]
  %v472 = vld [vmem:[%s1] sm:$0xff]
  %vm473 = vcmask 130048
  %v475 = vsel %vm473, %v23, 0
  %v478 = vsel %vm473, %v24, 0
  %v481 = vsel %vm473, %v25, 0
  %v484 = vsel %vm473, %v26, 0
  %v487 = vsel %vm473, %v27, 0
  %v490 = vsel %vm473, %v28, 0
  %v493 = vsel %vm473, %v29, 0
  %v496 = vsel %vm473, %v30, 0
  %v499 = vsel %vm473, %v31, 0
  %v502 = vsel %vm473, %v32, 0
  %v505 = vsel %vm473, %v33, 0
  %v508 = vsel %vm473, %v34, 0
  %v511 = vsel %vm473, %v35, 0
  %v514 = vsel %vm473, %v36, 0
  %v517 = vsel %vm473, %v37, 0
  %v520 = vsel %vm473, %v38, 0
  %v523 = vsel %vm473, %v39, 0
  %v526 = vsel %vm473, %v40, 0
  %v529 = vsel %vm473, %v41, 0
  %v532 = vsel %vm473, %v42, 0
  %v535 = vsel %vm473, %v43, 0
  %v538 = vsel %vm473, %v44, 0
  %v541 = vsel %vm473, %v45, 0
  %v544 = vsel %vm473, %v46, 0
  %v547 = vsel %vm473, %v47, 0
  %v550 = vsel %vm473, %v48, 0
  %v553 = vsel %vm473, %v49, 0
  %v556 = vsel %vm473, %v50, 0
  %v559 = vsel %vm473, %v51, 0
  %v562 = vsel %vm473, %v52, 0
  %v565 = vsel %vm473, %v53, 0
  %v568 = vsel %vm473, %v54, 0
  %v571 = vsel %vm473, %v471, 0
  %573 = vmatpush.xpose.msra.mxu0 0.0
  %574 = vmatpush.xpose.msra.mxu0 0.0
  %575 = vmatpush.xpose.msra.mxu0 0.0
  %576 = vmatpush.xpose.msra.mxu0 0.0
  %577 = vmatpush.xpose.msra.mxu0 0.0
  %578 = vmatpush.xpose.msra.mxu0 0.0
  %579 = vmatpush.xpose.msra.mxu0 0.0
  %580 = vmatpush.xpose.msra.mxu0 0.0
  %581 = vmatpush.xpose.msra.mxu0 0.0
  %582 = vmatpush.xpose.msra.mxu0 0.0
  %583 = vmatpush.xpose.msra.mxu0 0.0
  %584 = vmatpush.xpose.msra.mxu0 0.0
  %585 = vmatpush.xpose.msra.mxu0 0.0
  %586 = vmatpush.xpose.msra.mxu0 0.0
  %587 = vmatpush.xpose.msra.mxu0 0.0
  %588 = vmatpush.xpose.msra.mxu0 %v571
  %589 = vmatmul.f32.gmra.mxu0 %v475
  %v590 = vpop.f32.mrf.mxu0
  %v591 = vadd.f32 0.0, %v590
  %592 = vmatmul.f32.gmra.mxu0 %v478
  %v593 = vpop.f32.mrf.mxu0
  %v594 = vadd.f32 0.0, %v593
  %595 = vmatmul.f32.gmra.mxu0 %v481
  %v596 = vpop.f32.mrf.mxu0
  %v597 = vadd.f32 0.0, %v596
  %598 = vmatmul.f32.gmra.mxu0 %v484
  %v599 = vpop.f32.mrf.mxu0
  %v600 = vadd.f32 0.0, %v599
  %601 = vmatmul.f32.gmra.mxu0 %v487
  %v602 = vpop.f32.mrf.mxu0
  %v603 = vadd.f32 0.0, %v602
  %604 = vmatmul.f32.gmra.mxu0 %v490
  %v605 = vpop.f32.mrf.mxu0
  %v606 = vadd.f32 0.0, %v605
  %607 = vmatmul.f32.gmra.mxu0 %v493
  %v608 = vpop.f32.mrf.mxu0
  %v609 = vadd.f32 0.0, %v608
  %610 = vmatmul.f32.gmra.mxu0 %v496
  %v611 = vpop.f32.mrf.mxu0
  %v612 = vadd.f32 0.0, %v611
  %613 = vmatmul.f32.gmra.mxu0 %v499
  %v614 = vpop.f32.mrf.mxu0
  %v615 = vadd.f32 0.0, %v614
  %616 = vmatmul.f32.gmra.mxu0 %v502
  %v617 = vpop.f32.mrf.mxu0
  %v618 = vadd.f32 0.0, %v617
  %619 = vmatmul.f32.gmra.mxu0 %v505
  %v620 = vpop.f32.mrf.mxu0
  %v621 = vadd.f32 0.0, %v620
  %622 = vmatmul.f32.gmra.mxu0 %v508
  %v623 = vpop.f32.mrf.mxu0
  %v624 = vadd.f32 0.0, %v623
  %625 = vmatmul.f32.gmra.mxu0 %v511
  %v626 = vpop.f32.mrf.mxu0
  %v627 = vadd.f32 0.0, %v626
  %628 = vmatmul.f32.gmra.mxu0 %v514
  %v629 = vpop.f32.mrf.mxu0
  %v630 = vadd.f32 0.0, %v629
  %631 = vmatmul.f32.gmra.mxu0 %v517
  %v632 = vpop.f32.mrf.mxu0
  %v633 = vadd.f32 0.0, %v632
  %634 = vmatmul.f32.gmra.mxu0 %v520
  %v635 = vpop.f32.mrf.mxu0
  %v636 = vadd.f32 0.0, %v635
  %637 = vmatmul.f32.gmra.mxu0 %v523
  %v638 = vpop.f32.mrf.mxu0
  %v639 = vadd.f32 0.0, %v638
  %640 = vmatmul.f32.gmra.mxu0 %v526
  %v641 = vpop.f32.mrf.mxu0
  %v642 = vadd.f32 0.0, %v641
  %643 = vmatmul.f32.gmra.mxu0 %v529
  %v644 = vpop.f32.mrf.mxu0
  %v645 = vadd.f32 0.0, %v644
  %646 = vmatmul.f32.gmra.mxu0 %v532
  %v647 = vpop.f32.mrf.mxu0
  %v648 = vadd.f32 0.0, %v647
  %649 = vmatmul.f32.gmra.mxu0 %v535
  %v650 = vpop.f32.mrf.mxu0
  %v651 = vadd.f32 0.0, %v650
  %652 = vmatmul.f32.gmra.mxu0 %v538
  %v653 = vpop.f32.mrf.mxu0
  %v654 = vadd.f32 0.0, %v653
  %655 = vmatmul.f32.gmra.mxu0 %v541
  %v656 = vpop.f32.mrf.mxu0
  %v657 = vadd.f32 0.0, %v656
  %658 = vmatmul.f32.gmra.mxu0 %v544
  %v659 = vpop.f32.mrf.mxu0
  %v660 = vadd.f32 0.0, %v659
  %661 = vmatmul.f32.gmra.mxu0 %v547
  %v662 = vpop.f32.mrf.mxu0
  %v663 = vadd.f32 0.0, %v662
  %664 = vmatmul.f32.gmra.mxu0 %v550
  %v665 = vpop.f32.mrf.mxu0
  %v666 = vadd.f32 0.0, %v665
  %667 = vmatmul.f32.gmra.mxu0 %v553
  %v668 = vpop.f32.mrf.mxu0
  %v669 = vadd.f32 0.0, %v668
  %670 = vmatmul.f32.gmra.mxu0 %v556
  %v671 = vpop.f32.mrf.mxu0
  %v672 = vadd.f32 0.0, %v671
  %673 = vmatmul.f32.gmra.mxu0 %v559
  %v674 = vpop.f32.mrf.mxu0
  %v675 = vadd.f32 0.0, %v674
  %676 = vmatmul.f32.gmra.mxu0 %v562
  %v677 = vpop.f32.mrf.mxu0
  %v678 = vadd.f32 0.0, %v677
  %679 = vmatmul.f32.gmra.mxu0 %v565
  %v680 = vpop.f32.mrf.mxu0
  %v681 = vadd.f32 0.0, %v680
  %682 = vmatmul.f32.gmra.mxu0 %v568
  %v683 = vpop.f32.mrf.mxu0
  %v684 = vadd.f32 0.0, %v683
  %685 = vdwg.mxu0
  %686 = vmatpush.xpose.msra.mxu0 0.0
  %687 = vmatpush.xpose.msra.mxu0 0.0
  %688 = vmatpush.xpose.msra.mxu0 0.0
  %689 = vmatpush.xpose.msra.mxu0 0.0
  %690 = vmatpush.xpose.msra.mxu0 0.0
  %691 = vmatpush.xpose.msra.mxu0 0.0
  %692 = vmatpush.xpose.msra.mxu0 0.0
  %693 = vmatpush.xpose.msra.mxu0 0.0
  %694 = vmatpush.xpose.msra.mxu0 0.0
  %695 = vmatpush.xpose.msra.mxu0 0.0
  %696 = vmatpush.xpose.msra.mxu0 0.0
  %697 = vmatpush.xpose.msra.mxu0 0.0
  %698 = vmatpush.xpose.msra.mxu0 0.0
  %699 = vmatpush.xpose.msra.mxu0 0.0
  %700 = vmatpush.xpose.msra.mxu0 0.0
  %701 = vmatpush.xpose.msra.mxu0 %v472
  %702 = vmatmul.f32.gmra.mxu0 %v55
  %v703 = vpop.f32.mrf.mxu0
  %v704 = vadd.f32 %v591, %v703
  %705 = vmatmul.f32.gmra.mxu0 %v56
  %v706 = vpop.f32.mrf.mxu0
  %v707 = vadd.f32 %v594, %v706
  %708 = vmatmul.f32.gmra.mxu0 %v57
  %v709 = vpop.f32.mrf.mxu0
  %v710 = vadd.f32 %v597, %v709
  %711 = vmatmul.f32.gmra.mxu0 %v58
  %v712 = vpop.f32.mrf.mxu0
  %v713 = vadd.f32 %v600, %v712
  %714 = vmatmul.f32.gmra.mxu0 %v59
  %v715 = vpop.f32.mrf.mxu0
  %v716 = vadd.f32 %v603, %v715
  %717 = vmatmul.f32.gmra.mxu0 %v60
  %v718 = vpop.f32.mrf.mxu0
  %v719 = vadd.f32 %v606, %v718
  %720 = vmatmul.f32.gmra.mxu0 %v61
  %v721 = vpop.f32.mrf.mxu0
  %v722 = vadd.f32 %v609, %v721
  %723 = vmatmul.f32.gmra.mxu0 %v62
  %v724 = vpop.f32.mrf.mxu0
  %v725 = vadd.f32 %v612, %v724
  %726 = vmatmul.f32.gmra.mxu0 %v63
  %v727 = vpop.f32.mrf.mxu0
  %v728 = vadd.f32 %v615, %v727
  %729 = vmatmul.f32.gmra.mxu0 %v64
  %v730 = vpop.f32.mrf.mxu0
  %v731 = vadd.f32 %v618, %v730
  %732 = vmatmul.f32.gmra.mxu0 %v65
  %v733 = vpop.f32.mrf.mxu0
  %v734 = vadd.f32 %v621, %v733
  %735 = vmatmul.f32.gmra.mxu0 %v66
  %v736 = vpop.f32.mrf.mxu0
  %v737 = vadd.f32 %v624, %v736
  %738 = vmatmul.f32.gmra.mxu0 %v67
  %v739 = vpop.f32.mrf.mxu0
  %v740 = vadd.f32 %v627, %v739
  %741 = vmatmul.f32.gmra.mxu0 %v68
  %v742 = vpop.f32.mrf.mxu0
  %v743 = vadd.f32 %v630, %v742
  %744 = vmatmul.f32.gmra.mxu0 %v69
  %v745 = vpop.f32.mrf.mxu0
  %v746 = vadd.f32 %v633, %v745
  %747 = vmatmul.f32.gmra.mxu0 %v70
  %v748 = vpop.f32.mrf.mxu0
  %v749 = vadd.f32 %v636, %v748
  %750 = vmatmul.f32.gmra.mxu0 %v71
  %v751 = vpop.f32.mrf.mxu0
  %v752 = vadd.f32 %v639, %v751
  %753 = vmatmul.f32.gmra.mxu0 %v72
  %v754 = vpop.f32.mrf.mxu0
  %v755 = vadd.f32 %v642, %v754
  %756 = vmatmul.f32.gmra.mxu0 %v73
  %v757 = vpop.f32.mrf.mxu0
  %v758 = vadd.f32 %v645, %v757
  %759 = vmatmul.f32.gmra.mxu0 %v74
  %v760 = vpop.f32.mrf.mxu0
  %v761 = vadd.f32 %v648, %v760
  %762 = vmatmul.f32.gmra.mxu0 %v75
  %v763 = vpop.f32.mrf.mxu0
  %v764 = vadd.f32 %v651, %v763
  %765 = vmatmul.f32.gmra.mxu0 %v76
  %v766 = vpop.f32.mrf.mxu0
  %v767 = vadd.f32 %v654, %v766
  %768 = vmatmul.f32.gmra.mxu0 %v77
  %v769 = vpop.f32.mrf.mxu0
  %v770 = vadd.f32 %v657, %v769
  %771 = vmatmul.f32.gmra.mxu0 %v78
  %v772 = vpop.f32.mrf.mxu0
  %v773 = vadd.f32 %v660, %v772
  %774 = vmatmul.f32.gmra.mxu0 %v79
  %v775 = vpop.f32.mrf.mxu0
  %v776 = vadd.f32 %v663, %v775
  %777 = vmatmul.f32.gmra.mxu0 %v80
  %v778 = vpop.f32.mrf.mxu0
  %v779 = vadd.f32 %v666, %v778
  %780 = vmatmul.f32.gmra.mxu0 %v81
  %v781 = vpop.f32.mrf.mxu0
  %v782 = vadd.f32 %v669, %v781
  %783 = vmatmul.f32.gmra.mxu0 %v82
  %v784 = vpop.f32.mrf.mxu0
  %v785 = vadd.f32 %v672, %v784
  %786 = vmatmul.f32.gmra.mxu0 %v83
  %v787 = vpop.f32.mrf.mxu0
  %v788 = vadd.f32 %v675, %v787
  %789 = vmatmul.f32.gmra.mxu0 %v84
  %v790 = vpop.f32.mrf.mxu0
  %v791 = vadd.f32 %v678, %v790
  %792 = vmatmul.f32.gmra.mxu0 %v85
  %v793 = vpop.f32.mrf.mxu0
  %v794 = vadd.f32 %v681, %v793
  %795 = vmatmul.f32.gmra.mxu0 %v86
  %v796 = vpop.f32.mrf.mxu0
  %v797 = vadd.f32 %v684, %v796
  %798 = vdwg.mxu0
  %v799 = vadd.f32 %v704, %v122
  %v800 = vadd.f32 %v707, %v127
  %v801 = vadd.f32 %v710, %v132
  %v802 = vadd.f32 %v713, %v137
  %v803 = vadd.f32 %v716, %v142
  %v804 = vadd.f32 %v719, %v147
  %v805 = vadd.f32 %v722, %v152
  %v806 = vadd.f32 %v725, %v157
  %v807 = vadd.f32 %v728, %v162
  %v808 = vadd.f32 %v731, %v167
  %v809 = vadd.f32 %v734, %v172
  %v810 = vadd.f32 %v737, %v177
  %v811 = vadd.f32 %v740, %v182
  %v812 = vadd.f32 %v743, %v187
  %v813 = vadd.f32 %v746, %v192
  %v814 = vadd.f32 %v749, %v197
  %v815 = vadd.f32 %v752, %v202
  %v816 = vadd.f32 %v755, %v207
  %v817 = vadd.f32 %v758, %v212
  %v818 = vadd.f32 %v761, %v217
  %v819 = vadd.f32 %v764, %v222
  %v820 = vadd.f32 %v767, %v227
  %v821 = vadd.f32 %v770, %v232
  %v822 = vadd.f32 %v773, %v237
  %v823 = vadd.f32 %v776, %v242
  %v824 = vadd.f32 %v779, %v247
  %v825 = vadd.f32 %v782, %v252
  %v826 = vadd.f32 %v785, %v257
  %v827 = vadd.f32 %v788, %v262
  %v828 = vadd.f32 %v791, %v267
  %v829 = vadd.f32 %v794, %v272
  %v830 = vadd.f32 %v797, %v277
  %v831 = vtanh.pop %v799
  %v832 = vtanh.pop %v800
  %v833 = vtanh.pop %v801
  %v834 = vtanh.pop %v802
  %v835 = vtanh.pop %v803
  %v836 = vtanh.pop %v804
  %v837 = vtanh.pop %v805
  %v838 = vtanh.pop %v806
  %v839 = vtanh.pop %v807
  %v840 = vtanh.pop %v808
  %v841 = vtanh.pop %v809
  %v842 = vtanh.pop %v810
  %v843 = vtanh.pop %v811
  %v844 = vtanh.pop %v812
  %v845 = vtanh.pop %v813
  %v846 = vtanh.pop %v814
  %v847 = vtanh.pop %v815
  %v848 = vtanh.pop %v816
  %v849 = vtanh.pop %v817
  %v850 = vtanh.pop %v818
  %v851 = vtanh.pop %v819
  %v852 = vtanh.pop %v820
  %v853 = vtanh.pop %v821
  %v854 = vtanh.pop %v822
  %v855 = vtanh.pop %v823
  %v856 = vtanh.pop %v824
  %v857 = vtanh.pop %v825
  %v858 = vtanh.pop %v826
  %v859 = vtanh.pop %v827
  %v860 = vtanh.pop %v828
  %v861 = vtanh.pop %v829
  %v862 = vtanh.pop %v830
  %v863 = vmul.f32 %v831, %v314
  %v864 = vmul.f32 %v832, %v319
  %v865 = vmul.f32 %v833, %v324
  %v866 = vmul.f32 %v834, %v329
  %v867 = vmul.f32 %v835, %v334
  %v868 = vmul.f32 %v836, %v339
  %v869 = vmul.f32 %v837, %v344
  %v870 = vmul.f32 %v838, %v349
  %v871 = vmul.f32 %v839, %v354
  %v872 = vmul.f32 %v840, %v359
  %v873 = vmul.f32 %v841, %v364
  %v874 = vmul.f32 %v842, %v369
  %v875 = vmul.f32 %v843, %v374
  %v876 = vmul.f32 %v844, %v379
  %v877 = vmul.f32 %v845, %v384
  %v878 = vmul.f32 %v846, %v389
  %v879 = vmul.f32 %v847, %v394
  %v880 = vmul.f32 %v848, %v399
  %v881 = vmul.f32 %v849, %v404
  %v882 = vmul.f32 %v850, %v409
  %v883 = vmul.f32 %v851, %v414
  %v884 = vmul.f32 %v852, %v419
  %v885 = vmul.f32 %v853, %v424
  %v886 = vmul.f32 %v854, %v429
  %v887 = vmul.f32 %v855, %v434
  %v888 = vmul.f32 %v856, %v439
  %v889 = vmul.f32 %v857, %v444
  %v890 = vmul.f32 %v858, %v449
  %v891 = vmul.f32 %v859, %v454
  %v892 = vmul.f32 %v860, %v459
  %v893 = vmul.f32 %v861, %v464
  %v894 = vmul.f32 %v862, %v469
  %vm895 = vcmask 64512
  %v896 = vsel %vm895, %v863, 0.0
  %v897 = vsel %vm895, %v864, 0.0
  %v898 = vadd.f32 %v896, %v897
  %v899 = vrot.slane %v898, 4
  %v900 = vadd.f32 %v898, %v899
  %v901 = vrot.slane %v900, 2
  %v902 = vadd.f32 %v900, %v901
  %v903 = vrot.slane %v902, 1
  %v904 = vadd.f32 %v902, %v903
  %v905 = vsel %vm895, %v865, 0.0
  %v906 = vsel %vm895, %v866, 0.0
  %v907 = vadd.f32 %v905, %v906
  %v908 = vrot.slane %v907, 4
  %v909 = vadd.f32 %v907, %v908
  %v910 = vrot.slane %v909, 2
  %v911 = vadd.f32 %v909, %v910
  %v912 = vrot.slane %v911, 1
  %v913 = vadd.f32 %v911, %v912
  %v914 = vsel %vm895, %v867, 0.0
  %v915 = vsel %vm895, %v868, 0.0
  %v916 = vadd.f32 %v914, %v915
  %v917 = vrot.slane %v916, 4
  %v918 = vadd.f32 %v916, %v917
  %v919 = vrot.slane %v918, 2
  %v920 = vadd.f32 %v918, %v919
  %v921 = vrot.slane %v920, 1
  %v922 = vadd.f32 %v920, %v921
  %v923 = vsel %vm895, %v869, 0.0
  %v924 = vsel %vm895, %v870, 0.0
  %v925 = vadd.f32 %v923, %v924
  %v926 = vrot.slane %v925, 4
  %v927 = vadd.f32 %v925, %v926
  %v928 = vrot.slane %v927, 2
  %v929 = vadd.f32 %v927, %v928
  %v930 = vrot.slane %v929, 1
  %v931 = vadd.f32 %v929, %v930
  %v932 = vsel %vm895, %v871, 0.0
  %v933 = vsel %vm895, %v872, 0.0
  %v934 = vadd.f32 %v932, %v933
  %v935 = vrot.slane %v934, 4
  %v936 = vadd.f32 %v934, %v935
  %v937 = vrot.slane %v936, 2
  %v938 = vadd.f32 %v936, %v937
  %v939 = vrot.slane %v938, 1
  %v940 = vadd.f32 %v938, %v939
  %v941 = vsel %vm895, %v873, 0.0
  %v942 = vsel %vm895, %v874, 0.0
  %v943 = vadd.f32 %v941, %v942
  %v944 = vrot.slane %v943, 4
  %v945 = vadd.f32 %v943, %v944
  %v946 = vrot.slane %v945, 2
  %v947 = vadd.f32 %v945, %v946
  %v948 = vrot.slane %v947, 1
  %v949 = vadd.f32 %v947, %v948
  %v950 = vsel %vm895, %v875, 0.0
  %v951 = vsel %vm895, %v876, 0.0
  %v952 = vadd.f32 %v950, %v951
  %v953 = vrot.slane %v952, 4
  %v954 = vadd.f32 %v952, %v953
  %v955 = vrot.slane %v954, 2
  %v956 = vadd.f32 %v954, %v955
  %v957 = vrot.slane %v956, 1
  %v958 = vadd.f32 %v956, %v957
  %v959 = vsel %vm895, %v877, 0.0
  %v960 = vsel %vm895, %v878, 0.0
  %v961 = vadd.f32 %v959, %v960
  %v962 = vrot.slane %v961, 4
  %v963 = vadd.f32 %v961, %v962
  %v964 = vrot.slane %v963, 2
  %v965 = vadd.f32 %v963, %v964
  %v966 = vrot.slane %v965, 1
  %v967 = vadd.f32 %v965, %v966
  %v968 = vsel %vm895, %v879, 0.0
  %v969 = vsel %vm895, %v880, 0.0
  %v970 = vadd.f32 %v968, %v969
  %v971 = vrot.slane %v970, 4
  %v972 = vadd.f32 %v970, %v971
  %v973 = vrot.slane %v972, 2
  %v974 = vadd.f32 %v972, %v973
  %v975 = vrot.slane %v974, 1
  %v976 = vadd.f32 %v974, %v975
  %v977 = vsel %vm895, %v881, 0.0
  %v978 = vsel %vm895, %v882, 0.0
  %v979 = vadd.f32 %v977, %v978
  %v980 = vrot.slane %v979, 4
  %v981 = vadd.f32 %v979, %v980
  %v982 = vrot.slane %v981, 2
  %v983 = vadd.f32 %v981, %v982
  %v984 = vrot.slane %v983, 1
  %v985 = vadd.f32 %v983, %v984
  %v986 = vsel %vm895, %v883, 0.0
  %v987 = vsel %vm895, %v884, 0.0
  %v988 = vadd.f32 %v986, %v987
  %v989 = vrot.slane %v988, 4
  %v990 = vadd.f32 %v988, %v989
  %v991 = vrot.slane %v990, 2
  %v992 = vadd.f32 %v990, %v991
  %v993 = vrot.slane %v992, 1
  %v994 = vadd.f32 %v992, %v993
  %v995 = vsel %vm895, %v885, 0.0
  %v996 = vsel %vm895, %v886, 0.0
  %v997 = vadd.f32 %v995, %v996
  %v998 = vrot.slane %v997, 4
  %v999 = vadd.f32 %v997, %v998
  %v1000 = vrot.slane %v999, 2
  %v1001 = vadd.f32 %v999, %v1000
  %v1002 = vrot.slane %v1001, 1
  %v1003 = vadd.f32 %v1001, %v1002
  %v1004 = vsel %vm895, %v887, 0.0
  %v1005 = vsel %vm895, %v888, 0.0
  %v1006 = vadd.f32 %v1004, %v1005
  %v1007 = vrot.slane %v1006, 4
  %v1008 = vadd.f32 %v1006, %v1007
  %v1009 = vrot.slane %v1008, 2
  %v1010 = vadd.f32 %v1008, %v1009
  %v1011 = vrot.slane %v1010, 1
  %v1012 = vadd.f32 %v1010, %v1011
  %v1013 = vsel %vm895, %v889, 0.0
  %v1014 = vsel %vm895, %v890, 0.0
  %v1015 = vadd.f32 %v1013, %v1014
  %v1016 = vrot.slane %v1015, 4
  %v1017 = vadd.f32 %v1015, %v1016
  %v1018 = vrot.slane %v1017, 2
  %v1019 = vadd.f32 %v1017, %v1018
  %v1020 = vrot.slane %v1019, 1
  %v1021 = vadd.f32 %v1019, %v1020
  %v1022 = vsel %vm895, %v891, 0.0
  %v1023 = vsel %vm895, %v892, 0.0
  %v1024 = vadd.f32 %v1022, %v1023
  %v1025 = vrot.slane %v1024, 4
  %v1026 = vadd.f32 %v1024, %v1025
  %v1027 = vrot.slane %v1026, 2
  %v1028 = vadd.f32 %v1026, %v1027
  %v1029 = vrot.slane %v1028, 1
  %v1030 = vadd.f32 %v1028, %v1029
  %v1031 = vsel %vm895, %v893, 0.0
  %v1032 = vsel %vm895, %v894, 0.0
  %v1033 = vadd.f32 %v1031, %v1032
  %v1034 = vrot.slane %v1033, 4
  %v1035 = vadd.f32 %v1033, %v1034
  %v1036 = vrot.slane %v1035, 2
  %v1037 = vadd.f32 %v1035, %v1036
  %v1038 = vrot.slane %v1037, 1
  %v1039 = vadd.f32 %v1037, %v1038
  %vm1056 = vcmask 1041409
  %v1057 = vsel %vm1056, %v913, %v904
  %vm1058 = vcmask 1042434
  %v1059 = vsel %vm1058, %v922, %v1057
  %vm1060 = vcmask 1043459
  %v1061 = vsel %vm1060, %v931, %v1059
  %vm1062 = vcmask 1044484
  %v1063 = vsel %vm1062, %v940, %v1061
  %vm1064 = vcmask 1045509
  %v1065 = vsel %vm1064, %v949, %v1063
  %vm1066 = vcmask 1046534
  %v1067 = vsel %vm1066, %v958, %v1065
  %vm1068 = vcmask 1047559
  %v1069 = vsel %vm1068, %v967, %v1067
  %v1070 = vsel %vm1056, %v985, %v976
  %v1071 = vsel %vm1058, %v994, %v1070
  %v1072 = vsel %vm1060, %v1003, %v1071
  %v1073 = vsel %vm1062, %v1012, %v1072
  %v1074 = vsel %vm1064, %v1021, %v1073
  %v1075 = vsel %vm1066, %v1030, %v1074
  %v1076 = vsel %vm1068, %v1039, %v1075
  %1079 = vst.msk [vmem:[%s6] sm:$0xff] %vm895, %v1069
  %1080 = vst.msk [vmem:[%s6 + $0x8] sm:$0xff] %vm895, %v1076
  // Predicated region
  $region26: #{attention_mlp.1} parent=0 // pred_check
    _
  $region27: #{attention_mlp.1} parent=0 // pred_check_branch
    %1082 = sbr.rel (0) target = $region29
  $region28: #{attention_mlp.1} parent=0 // pred_region
    _
  $region29: #{attention_mlp.1} parent=0 // pred_fallthru
    _
  // Predicated region
  $region30: #{attention_mlp.1} parent=0 // pred_check
    _
  $region31: #{attention_mlp.1} parent=0 // pred_check_branch
    %1084 = sbr.rel (0) target = $region33
  $region32: #{attention_mlp.1} parent=0 // pred_region
    _
  $region33: #{attention_mlp.1} parent=0 // pred_fallthru
    _

</llo_original>
